<compile_context>
chip_gen: v7x
topology: tpu7x:2x2x1
jax: 0.10.0
libtpu: 0.0.40
codegen_flags: <defaults>
</compile_context>

<pallas_src>
import functools

import jax
import jax.numpy as jnp
from jax.experimental import pallas as pl
from jax.experimental.pallas import tpu as pltpu

_MIB = 1024 * 1024


# ----------------------------------------------------------------------------
# Device / sizing helpers
# ----------------------------------------------------------------------------
@functools.lru_cache(maxsize=1)
def _vmem_budget_bytes():
    """~75% of this generation's physical VMEM (headroom for Mosaic scratch)."""
    cap = 64 * _MIB  # conservative default (v7x per-TC VMEM)
    try:
        info = pltpu.get_tpu_info()
        c = getattr(info, "vmem_capacity_bytes", None)
        if c:
            cap = int(c)
    except Exception:
        pass
    return (cap * 3) // 4  # ~48 MiB on v7x, ~96 MiB on v5e/v6e


def _pick_batch_tile(B, bytes_per_batch, budget, min_step_bytes=4 * _MIB):
    """Largest divisor of B whose buffered block footprint fits `budget`.

    Prefers >= 2 batch grid steps (so v7x megacore can split the only
    "parallel" axis without duplicating the read-once input DMA) as long as
    each step still moves a roofline-friendly amount of data.
    Returns None if not even Bt=1 fits.
    """
    fits = [d for d in range(B, 0, -1)
            if B % d == 0 and d * bytes_per_batch <= budget]
    if not fits:
        return None
    best = fits[0]  # largest divisor that fits the budget
    threshold = min(min_step_bytes, best * bytes_per_batch)
    for d in fits:
        if B // d >= 2 and d * bytes_per_batch >= threshold:
            return d
    return best


# ----------------------------------------------------------------------------
# Kernel bodies
# ----------------------------------------------------------------------------
def _make_window_kernel(S, K, real_ch, H, W, use_row_band):
    """Scatter K*K input channel-group planes into one window's output plane."""

    def kernel(x_ref, o_ref):
        # x_ref: (Bt, S*S*real_ch, H, W)   full channel stack for this batch tile
        # o_ref: (Bt, real_ch, K*H, K*W)   one (i, j) window's output plane
        i = pl.program_id(1)
        j = pl.program_id(2)
        for a in range(K):                           # output row tile
            base = ((i + a) * S + j) * real_ch       # first group of this row band
            if use_row_band:
                # W not lane-aligned but K*W is: gather the K column tiles into
                # one (Bt, rc, H, K*W) band (lane shifts on the otherwise idle
                # XLU) and issue a single unmasked wide store per row band
                # instead of K narrow masked ones.
                band = jnp.concatenate(
                    [x_ref[:, pl.ds(base + bb * real_ch, real_ch), :, :]
                     for bb in range(K)],
                    axis=-1)
                o_ref[:, :, a * H:(a + 1) * H, :] = band
            else:
                for bb in range(K):                  # output col tile
                    o_ref[:, :, a * H:(a + 1) * H, bb * W:(bb + 1) * W] = (
                        x_ref[:, pl.ds(base + bb * real_ch, real_ch), :, :])

    return kernel


def _copy_kernel(x_ref, o_ref):
    # Per-group fallback path: whole block is one (Bt, real_ch, H, W) tile.
    o_ref[...] = x_ref[...]


# ----------------------------------------------------------------------------
# Wrapper
# ----------------------------------------------------------------------------
def fuse_overlap(x, slc, kernel=2):
    """Pallas implementation of FuseOverlap.forward (NCHW input)."""
    B, C, H, W = x.shape
    S, K = int(slc), int(kernel)
    assert C % (S * S) == 0, "channels must be divisible by slice**2"
    real_ch = C // (S * S)
    n = S - K + 1
    assert n >= 1, "kernel must be <= slice"

    OC, OH, OW = n * n * real_ch, K * H, K * W
    itemsize = jnp.dtype(x.dtype).itemsize
    out_shape = jax.ShapeDtypeStruct((B, OC, OH, OW), x.dtype)

    budget = _vmem_budget_bytes()
    # Pure-bandwidth cost hint for XLA's scheduler.
    cost = pl.CostEstimate(
        flops=0, transcendentals=0,
        bytes_accessed=int(B * (C * H * W + OC * OH * OW) * itemsize))

    # Row-band store fusion only where it turns masked stores into unmasked
    # ones; otherwise keep the simple per-tile copies.
    use_row_band = (K > 1) and (W % 128 != 0) and ((K * W) % 128 == 0)
    sublane = 8 * max(1, 4 // itemsize)  # 8 f32 / 16 bf16 / 32 int8

    # ---------------- main (read-once) window path ----------------
    def run_window_path(single_buffer_input):
        n_in_buf = 1 if single_buffer_input else 2
        per_batch = (n_in_buf * C * H * W + 2 * real_ch * OH * OW) * itemsize
        Bt = _pick_batch_tile(B, per_batch, budget)
        if Bt is None:
            Bt = 1  # best effort; stays correct, may spill for huge shapes
        required = Bt * per_batch
        vmem_limit = int(min(budget,
                             max(16 * _MIB, required + required // 4 + _MIB)))

        in_kwargs = {}
        if single_buffer_input:
            # Input block index is constant across the n*n inner steps -- a
            # second buffer would hold identical data.
            in_kwargs["pipeline_mode"] = pl.Buffered(1)
        in_spec = pl.BlockSpec((Bt, C, H, W),
                               lambda b, i, j: (b, 0, 0, 0), **in_kwargs)
        out_spec = pl.BlockSpec((Bt, real_ch, OH, OW),
                                lambda b, i, j: (b, i * n + j, 0, 0))

        call = pl.pallas_call(
            _make_window_kernel(S, K, real_ch, H, W, use_row_band),
            out_shape=out_shape,
            grid=(B // Bt, n, n),
            in_specs=[in_spec],
            out_specs=out_spec,
            compiler_params=pltpu.CompilerParams(
                # Batch-only megacore sharding: keeps read-once per core on
                # v7x (i/j parallel would duplicate the full input DMA).
                dimension_semantics=("parallel", "arbitrary", "arbitrary"),
                vmem_limit_bytes=vmem_limit,
            ),
            cost_estimate=cost,
        )
        return call(x)

    # ---------------- per-group fallback path (huge shapes, v7x 64 MiB) -----
    def run_per_group_path():
        per_batch = 4 * real_ch * H * W * itemsize  # 2x(in+out) double-buffered
        Bt = _pick_batch_tile(B, per_batch, budget) or 1
        required = Bt * per_batch
        vmem_limit = int(min(budget,
                             max(16 * _MIB, required + required // 4 + _MIB)))

        in_spec = pl.BlockSpec(
            (Bt, real_ch, H, W),
            lambda b, i, j, a, bb: (b, (i + a) * S + (j + bb), 0, 0))
        out_spec = pl.BlockSpec(
            (Bt, real_ch, H, W),
            lambda b, i, j, a, bb: (b, i * n + j, a, bb))

        call = pl.pallas_call(
            _copy_kernel,
            out_shape=out_shape,
            grid=(B // Bt, n, n, K, K),
            in_specs=[in_spec],
            out_specs=out_spec,
            compiler_params=pltpu.CompilerParams(
                dimension_semantics=("parallel",) + ("arbitrary",) * 4,
                vmem_limit_bytes=vmem_limit,
            ),
            cost_estimate=cost,
        )
        return call(x)

    # Path choice: read-once window path whenever its Bt=1 footprint fits the
    # VMEM budget; otherwise fall back to per-group tiling when the (H, W)
    # output block satisfies the (8,128) rule for this dtype.
    window_fits = ((C * H * W + 2 * real_ch * OH * OW) * itemsize) <= budget
    per_group_ok = (W % 128 == 0) and (H % sublane == 0)
    if (not window_fits) and per_group_ok:
        return run_per_group_path()

    try:
        return run_window_path(single_buffer_input=True)
    except Exception:
        # pl.Buffered(1) rejected by this jax/Mosaic build: fall back to the
        # default double-buffered input (identical semantics, more VMEM).
        return run_window_path(single_buffer_input=False)


# ----------------------------------------------------------------------------
# Pure-JAX reference (direct port of the PyTorch module) for validation
# ----------------------------------------------------------------------------
def _inverted_reorg_ref(x, s):
    B, C, H, W = x.shape
    c = C // (s * s)
    x = x.reshape(B, s * s, c, H, W).transpose(0, 2, 1, 3, 4)
    x = x.reshape(B, c, s, s, H, W).transpose(0, 1, 2, 4, 3, 5)
    return x.reshape(B, c, s * H, s * W)


def fuse_overlap_ref(x, slc, kernel=2):
    B, C, H, W = x.shape
    real_ch = C // slc // slc
    patches = []
    for i in range(slc - kernel + 1):
        for j in range(slc - kernel + 1):
            groups = []
            for a in range(i, i + kernel):
                for bb in range(j, j + kernel):
                    start = bb * real_ch + a * slc * real_ch
                    groups.append(x[:, start:start + real_ch, :, :])
            y = jnp.concatenate(groups, axis=1)
            patches.append(_inverted_reorg_ref(y, kernel))
    return jnp.concatenate(patches, axis=1)


# ----------------------------------------------------------------------------
# Self-test
# ----------------------------------------------------------------------------
if __name__ == "__main__":
    k1, k2 = jax.random.split(jax.random.PRNGKey(0))

    # Config 1: slice=3, kernel=2 -> 4 overlapping windows.
    S, K, RC = 3, 2, 4
    x = jax.random.normal(k1, (2, S * S * RC, 16, 16), dtype=jnp.float32)
    out = jax.block_until_ready(fuse_overlap(x, S, K))
    ref = fuse_overlap_ref(x, S, K)
    assert out.shape == ref.shape == (2, 16, 32, 32), out.shape
    assert jnp.allclose(out, ref), "Pallas mismatch (slice=3, kernel=2)"

    # Config 2: slice == kernel == 2 -> single window (pure inverted reorg).
    S2, K2, RC2 = 2, 2, 4
    x2 = jax.random.normal(k2, (2, S2 * S2 * RC2, 16, 16), dtype=jnp.float32)
    out2 = jax.block_until_ready(fuse_overlap(x2, S2, K2))
    ref2 = fuse_overlap_ref(x2, S2, K2)
    assert out2.shape == ref2.shape == (2, 4, 32, 32), out2.shape
    assert jnp.allclose(out2, ref2), "Pallas mismatch (slice=2, kernel=2)"

    print("KERNEL_OK")
</pallas_src>

<mosaic_0001>
module attributes {stable_mosaic.version = 11 : i64} {
  func.func @kernel(%arg0: i32, %arg1: i32, %arg2: i32, %arg3: memref<2x36x16x16xf32, #tpu.memory_space<vmem>>, %arg4: memref<2x4x32x32xf32, #tpu.memory_space<vmem>>) attributes {dimension_semantics = [#tpu.dimension_semantics<parallel>, #tpu.dimension_semantics<arbitrary>, #tpu.dimension_semantics<arbitrary>], iteration_bounds = array<i64: 1, 2, 2>, scalar_prefetch = 0 : i64, scratch_operands = 0 : i64, tpu.core_type = #tpu.core_type<tc>, window_params = [{pipeline_mode = #tpu.pipeline_mode<synchronous>, transform_indices = @transform_0, window_bounds = array<i64: 2, 36, 16, 16>}, {transform_indices = @transform_1, window_bounds = array<i64: 2, 4, 32, 32>}]} {
    %c0_i32 = arith.constant 0 : i32
    %0 = arith.addi %arg1, %c0_i32 : i32
    %c3_i32 = arith.constant 3 : i32
    %1 = arith.muli %0, %c3_i32 : i32
    %2 = arith.addi %1, %arg2 : i32
    %c4_i32 = arith.constant 4 : i32
    %3 = arith.muli %2, %c4_i32 : i32
    %c0_i32_0 = arith.constant 0 : i32
    %4 = arith.addi %3, %c0_i32_0 : i32
    %c0 = arith.constant 0 : index
    %5 = arith.index_cast %4 : i32 to index
    %c0_1 = arith.constant 0 : index
    %c0_2 = arith.constant 0 : index
    %6 = vector.load %arg3[%c0, %5, %c0_1, %c0_2] : memref<2x36x16x16xf32, #tpu.memory_space<vmem>>, vector<2x4x16x16xf32>
    %c0_3 = arith.constant 0 : index
    %c0_4 = arith.constant 0 : index
    %c0_5 = arith.constant 0 : index
    %c0_6 = arith.constant 0 : index
    %7 = vector.load %arg4[%c0_3, %c0_4, %c0_5, %c0_6] : memref<2x4x32x32xf32, #tpu.memory_space<vmem>>, vector<2x4x16x16xf32>
    tpu.vector_store %arg4[%c0_3, %c0_4, %c0_5, %c0_6], %6 {strides = array<i32>} : memref<2x4x32x32xf32, #tpu.memory_space<vmem>>, vector<2x4x16x16xf32>,
    %c4_i32_7 = arith.constant 4 : i32
    %8 = arith.addi %3, %c4_i32_7 : i32
    %c0_8 = arith.constant 0 : index
    %9 = arith.index_cast %8 : i32 to index
    %c0_9 = arith.constant 0 : index
    %c0_10 = arith.constant 0 : index
    %10 = vector.load %arg3[%c0_8, %9, %c0_9, %c0_10] : memref<2x36x16x16xf32, #tpu.memory_space<vmem>>, vector<2x4x16x16xf32>
    %c0_11 = arith.constant 0 : index
    %c0_12 = arith.constant 0 : index
    %c0_13 = arith.constant 0 : index
    %c16 = arith.constant 16 : index
    %11 = vector.load %arg4[%c0_11, %c0_12, %c0_13, %c16] : memref<2x4x32x32xf32, #tpu.memory_space<vmem>>, vector<2x4x16x16xf32>
    tpu.vector_store %arg4[%c0_11, %c0_12, %c0_13, %c16], %10 {strides = array<i32>} : memref<2x4x32x32xf32, #tpu.memory_space<vmem>>, vector<2x4x16x16xf32>,
    %c1_i32 = arith.constant 1 : i32
    %12 = arith.addi %arg1, %c1_i32 : i32
    %c3_i32_14 = arith.constant 3 : i32
    %13 = arith.muli %12, %c3_i32_14 : i32
    %14 = arith.addi %13, %arg2 : i32
    %c4_i32_15 = arith.constant 4 : i32
    %15 = arith.muli %14, %c4_i32_15 : i32
    %c0_i32_16 = arith.constant 0 : i32
    %16 = arith.addi %15, %c0_i32_16 : i32
    %c0_17 = arith.constant 0 : index
    %17 = arith.index_cast %16 : i32 to index
    %c0_18 = arith.constant 0 : index
    %c0_19 = arith.constant 0 : index
    %18 = vector.load %arg3[%c0_17, %17, %c0_18, %c0_19] : memref<2x36x16x16xf32, #tpu.memory_space<vmem>>, vector<2x4x16x16xf32>
    %c0_20 = arith.constant 0 : index
    %c0_21 = arith.constant 0 : index
    %c16_22 = arith.constant 16 : index
    %c0_23 = arith.constant 0 : index
    %19 = vector.load %arg4[%c0_20, %c0_21, %c16_22, %c0_23] : memref<2x4x32x32xf32, #tpu.memory_space<vmem>>, vector<2x4x16x16xf32>
    tpu.vector_store %arg4[%c0_20, %c0_21, %c16_22, %c0_23], %18 {strides = array<i32>} : memref<2x4x32x32xf32, #tpu.memory_space<vmem>>, vector<2x4x16x16xf32>,
    %c4_i32_24 = arith.constant 4 : i32
    %20 = arith.addi %15, %c4_i32_24 : i32
    %c0_25 = arith.constant 0 : index
    %21 = arith.index_cast %20 : i32 to index
    %c0_26 = arith.constant 0 : index
    %c0_27 = arith.constant 0 : index
    %22 = vector.load %arg3[%c0_25, %21, %c0_26, %c0_27] : memref<2x36x16x16xf32, #tpu.memory_space<vmem>>, vector<2x4x16x16xf32>
    %c0_28 = arith.constant 0 : index
    %c0_29 = arith.constant 0 : index
    %c16_30 = arith.constant 16 : index
    %c16_31 = arith.constant 16 : index
    %23 = vector.load %arg4[%c0_28, %c0_29, %c16_30, %c16_31] : memref<2x4x32x32xf32, #tpu.memory_space<vmem>>, vector<2x4x16x16xf32>
    tpu.vector_store %arg4[%c0_28, %c0_29, %c16_30, %c16_31], %22 {strides = array<i32>} : memref<2x4x32x32xf32, #tpu.memory_space<vmem>>, vector<2x4x16x16xf32>,
    return
  }
  func.func @transform_0(%arg0: i32, %arg1: i32, %arg2: i32) -> (i32, i32, i32, i32) {
    %c0_i32 = arith.constant 0 : i32
    %c0_i32_0 = arith.constant 0 : i32
    %c0_i32_1 = arith.constant 0 : i32
    %c0_i32_2 = arith.constant 0 : i32
    return %arg0, %c0_i32, %c0_i32_0, %c0_i32_1 : i32, i32, i32, i32
  }
  func.func @transform_1(%arg0: i32, %arg1: i32, %arg2: i32) -> (i32, i32, i32, i32) {
    %c2_i32 = arith.constant 2 : i32
    %0 = arith.muli %arg1, %c2_i32 : i32
    %1 = arith.addi %0, %arg2 : i32
    %c0_i32 = arith.constant 0 : i32
    %c0_i32_0 = arith.constant 0 : i32
    %c0_i32_1 = arith.constant 0 : i32
    return %arg0, %1, %c0_i32, %c0_i32_0 : i32, i32, i32, i32
  }
}

module attributes {stable_mosaic.version = 11 : i64} {
  func.func @kernel(%arg0: i32, %arg1: i32, %arg2: i32, %arg3: memref<2x36x16x16xf32, #tpu.memory_space<vmem>>, %arg4: memref<2x4x32x32xf32, #tpu.memory_space<vmem>>) attributes {dimension_semantics = [#tpu.dimension_semantics<parallel>, #tpu.dimension_semantics<arbitrary>, #tpu.dimension_semantics<arbitrary>], iteration_bounds = array<i64: 1, 2, 2>, scalar_prefetch = 0 : i64, scratch_operands = 0 : i64, tpu.core_type = #tpu.core_type<tc>, window_params = [{transform_indices = @transform_0, window_bounds = array<i64: 2, 36, 16, 16>}, {transform_indices = @transform_1, window_bounds = array<i64: 2, 4, 32, 32>}]} {
    %c0_i32 = arith.constant 0 : i32
    %0 = arith.addi %arg1, %c0_i32 : i32
    %c3_i32 = arith.constant 3 : i32
    %1 = arith.muli %0, %c3_i32 : i32
    %2 = arith.addi %1, %arg2 : i32
    %c4_i32 = arith.constant 4 : i32
    %3 = arith.muli %2, %c4_i32 : i32
    %c0_i32_0 = arith.constant 0 : i32
    %4 = arith.addi %3, %c0_i32_0 : i32
    %c0 = arith.constant 0 : index
    %5 = arith.index_cast %4 : i32 to index
    %c0_1 = arith.constant 0 : index
    %c0_2 = arith.constant 0 : index
    %6 = vector.load %arg3[%c0, %5, %c0_1, %c0_2] : memref<2x36x16x16xf32, #tpu.memory_space<vmem>>, vector<2x4x16x16xf32>
    %c0_3 = arith.constant 0 : index
    %c0_4 = arith.constant 0 : index
    %c0_5 = arith.constant 0 : index
    %c0_6 = arith.constant 0 : index
    %7 = vector.load %arg4[%c0_3, %c0_4, %c0_5, %c0_6] : memref<2x4x32x32xf32, #tpu.memory_space<vmem>>, vector<2x4x16x16xf32>
    tpu.vector_store %arg4[%c0_3, %c0_4, %c0_5, %c0_6], %6 {strides = array<i32>} : memref<2x4x32x32xf32, #tpu.memory_space<vmem>>, vector<2x4x16x16xf32>,
    %c4_i32_7 = arith.constant 4 : i32
    %8 = arith.addi %3, %c4_i32_7 : i32
    %c0_8 = arith.constant 0 : index
    %9 = arith.index_cast %8 : i32 to index
    %c0_9 = arith.constant 0 : index
    %c0_10 = arith.constant 0 : index
    %10 = vector.load %arg3[%c0_8, %9, %c0_9, %c0_10] : memref<2x36x16x16xf32, #tpu.memory_space<vmem>>, vector<2x4x16x16xf32>
    %c0_11 = arith.constant 0 : index
    %c0_12 = arith.constant 0 : index
    %c0_13 = arith.constant 0 : index
    %c16 = arith.constant 16 : index
    %11 = vector.load %arg4[%c0_11, %c0_12, %c0_13, %c16] : memref<2x4x32x32xf32, #tpu.memory_space<vmem>>, vector<2x4x16x16xf32>
    tpu.vector_store %arg4[%c0_11, %c0_12, %c0_13, %c16], %10 {strides = array<i32>} : memref<2x4x32x32xf32, #tpu.memory_space<vmem>>, vector<2x4x16x16xf32>,
    %c1_i32 = arith.constant 1 : i32
    %12 = arith.addi %arg1, %c1_i32 : i32
    %c3_i32_14 = arith.constant 3 : i32
    %13 = arith.muli %12, %c3_i32_14 : i32
    %14 = arith.addi %13, %arg2 : i32
    %c4_i32_15 = arith.constant 4 : i32
    %15 = arith.muli %14, %c4_i32_15 : i32
    %c0_i32_16 = arith.constant 0 : i32
    %16 = arith.addi %15, %c0_i32_16 : i32
    %c0_17 = arith.constant 0 : index
    %17 = arith.index_cast %16 : i32 to index
    %c0_18 = arith.constant 0 : index
    %c0_19 = arith.constant 0 : index
    %18 = vector.load %arg3[%c0_17, %17, %c0_18, %c0_19] : memref<2x36x16x16xf32, #tpu.memory_space<vmem>>, vector<2x4x16x16xf32>
    %c0_20 = arith.constant 0 : index
    %c0_21 = arith.constant 0 : index
    %c16_22 = arith.constant 16 : index
    %c0_23 = arith.constant 0 : index
    %19 = vector.load %arg4[%c0_20, %c0_21, %c16_22, %c0_23] : memref<2x4x32x32xf32, #tpu.memory_space<vmem>>, vector<2x4x16x16xf32>
    tpu.vector_store %arg4[%c0_20, %c0_21, %c16_22, %c0_23], %18 {strides = array<i32>} : memref<2x4x32x32xf32, #tpu.memory_space<vmem>>, vector<2x4x16x16xf32>,
    %c4_i32_24 = arith.constant 4 : i32
    %20 = arith.addi %15, %c4_i32_24 : i32
    %c0_25 = arith.constant 0 : index
    %21 = arith.index_cast %20 : i32 to index
    %c0_26 = arith.constant 0 : index
    %c0_27 = arith.constant 0 : index
    %22 = vector.load %arg3[%c0_25, %21, %c0_26, %c0_27] : memref<2x36x16x16xf32, #tpu.memory_space<vmem>>, vector<2x4x16x16xf32>
    %c0_28 = arith.constant 0 : index
    %c0_29 = arith.constant 0 : index
    %c16_30 = arith.constant 16 : index
    %c16_31 = arith.constant 16 : index
    %23 = vector.load %arg4[%c0_28, %c0_29, %c16_30, %c16_31] : memref<2x4x32x32xf32, #tpu.memory_space<vmem>>, vector<2x4x16x16xf32>
    tpu.vector_store %arg4[%c0_28, %c0_29, %c16_30, %c16_31], %22 {strides = array<i32>} : memref<2x4x32x32xf32, #tpu.memory_space<vmem>>, vector<2x4x16x16xf32>,
    return
  }
  func.func @transform_0(%arg0: i32, %arg1: i32, %arg2: i32) -> (i32, i32, i32, i32) {
    %c0_i32 = arith.constant 0 : i32
    %c0_i32_0 = arith.constant 0 : i32
    %c0_i32_1 = arith.constant 0 : i32
    %c0_i32_2 = arith.constant 0 : i32
    return %arg0, %c0_i32, %c0_i32_0, %c0_i32_1 : i32, i32, i32, i32
  }
  func.func @transform_1(%arg0: i32, %arg1: i32, %arg2: i32) -> (i32, i32, i32, i32) {
    %c2_i32 = arith.constant 2 : i32
    %0 = arith.muli %arg1, %c2_i32 : i32
    %1 = arith.addi %0, %arg2 : i32
    %c0_i32 = arith.constant 0 : i32
    %c0_i32_0 = arith.constant 0 : i32
    %c0_i32_1 = arith.constant 0 : i32
    return %arg0, %1, %c0_i32, %c0_i32_0 : i32, i32, i32, i32
  }
}

</mosaic_0001>

<llo_original>
// kernel: tpu_custom_call.1
$region0: #{tpu_custom_call.1}
  #allocation0 [shape = 'u32[]', space=smem, size = 0x4, offset = 0x4, fixed_abs, tag = 'smem constant byte address 0x4 - core index']
  #allocation1 [shape = 'u32[144,128]{1,0:T(1,128)}', space=vmem, size = 0x12000, scoped, tag = 'internal scratch']
  #allocation4 [shape = 's32[]', space=sflag, size = 0x4, offset = 0, fixed_abs, tag = 'sflag constant byte address 0x0 - dummy sync flag']
  %s0 = inlined_call_operand.vmem [shape: f32[2,36,16,16], index: 0, kind: input, shape index: {}]
  %s1 = inlined_call_operand.hbm [shape: f32[2,16,32,32], index: 1, kind: output, shape index: {}]
  %s2 = sld [smem:[#allocation0]]
  $region37: #{tpu_custom_call.1} parent=0
    _
  %s4 = ssub.s32 1, %s2
  %s5 = scalar_select 0, %s4, %s2
  $region1: #{tpu_custom_call.1} parent=0
    #allocation2 [shape = 'u8[262144]{0}', space=vmem, size = 0x40000, scoped, tag = 'output window, operand 0']
    #allocation3 [shape = 's32[2]{0}', space=sflag, size = 0x8, scoped, tag = 'scoped memory for tpu_custom_call.1']
    %6 = vsyncpa [#allocation3], 0
    %s7 = scalar_lea.sflag [#allocation3], 1
    %8 = vsyncpa %s7, 0
    loop: start=0, step=1, limit=6
    $region2: #{tpu_custom_call.1} parent=1 // loop_pre_header
      _
    $region3: #{tpu_custom_call.1} parent=1 // loop_header
      %s10 = sphi 0, %s14
      %p11 = scmp.ge.s32.totalorder %s10, 6
      %s17 = sphi 0, %s36
      %s18 = sphi 0, %s32
      %s19 = sphi 0, %s28
      %s20 = sphi 0, %s17
      %s21 = sphi 0, %s18
      %s22 = sphi 0, %s19
      %s23 = sphi 0, %s20
      %s24 = sphi 0, %s21
      %s25 = sphi 0, %s22
      %s39 = sphi 0, %s41
      %s42 = sphi 0, %s39
      %s43 = sphi 0, %s42
      %s59 = sphi 0, %s43
      %s71 = sphi 0, %s73
      %s74 = sphi 0, %s71
      %s75 = sphi 0, %s74
      %s91 = sphi 0, %s75
    $region4: #{tpu_custom_call.1} parent=1 // loop_header_branch
      %13 = sbr.rel (%p11) target = $region8
    $region5: #{tpu_custom_call.1} parent=1 // loop_body
      %s15 = ssub.s32 %s10, 1
      %s16 = ssub.s32 %s10, 2
      %s26 = sadd.s32 1, %s19
      %p27 = scmp.ge.s32.totalorder %s26, 2
      %s28 = scalar_select %p27, 0, %s26
      %s29 = sadd.s32 1, %s18
      %s30 = scalar_select %p27, %s29, %s18
      %p31 = scmp.ge.s32.totalorder %s30, 2
      %s32 = scalar_select %p31, 0, %s30
      %s33 = sadd.s32 1, %s17
      %s34 = scalar_select %p31, %s33, %s17
      %p35 = scmp.ge.s32.totalorder %s34, 1
      %s36 = scalar_select %p35, 0, %s34
      %s37 = ssub.s32 %s17, %s36
      %p38 = scmp.eq.s32.totalorder %s37, 0
      %s40 = sadd.s32 %s39, 1
      %s41 = scalar_select %p38, %s39, %s40
      %p44 = pneg %p38
      %p45 = scmp.eq.s32.totalorder %s10, 3
      %p46 = por %p44, %p45
      %p47 = scmp.ne.s32.totalorder %s39, %s42
      %p48 = scmp.eq.s32.totalorder %s10, 0
      %p49 = por %p47, %p48
      %p50 = scmp.ne.s32.totalorder %s39, %s42
      %p51 = scmp.eq.s32.totalorder %s15, 3
      %p52 = por %p50, %p51
      %p53 = scmp.ne.s32.totalorder %s42, %s43
      %p54 = scmp.eq.s32.totalorder %s15, 0
      %p55 = por %p53, %p54
      %p56 = scmp.ne.s32.totalorder %s42, %s43
      %p57 = scmp.eq.s32.totalorder %s16, 3
      %p58 = por %p56, %p57
      %p60 = scmp.ne.s32.totalorder %s43, %s59
      %p61 = scmp.eq.s32.totalorder %s16, 0
      %p62 = por %p60, %p61
      %s63 = smul.u32 %s18, 2
      %s64 = sadd.s32 %s63, %s19
      %s65 = smul.u32 %s32, 2
      %s66 = sadd.s32 %s65, %s28
      %s67 = ssub.s32 %s17, %s36
      %s68 = ssub.s32 %s64, %s66
      %s69 = sor.u32 %s67, %s68
      %p70 = scmp.eq.s32.totalorder %s69, 0
      %s72 = sadd.s32 %s71, 1
      %s73 = scalar_select %p70, %s71, %s72
      %p76 = pneg %p70
      %p77 = scmp.eq.s32.totalorder %s10, 3
      %p78 = por %p76, %p77
      %p79 = scmp.ne.s32.totalorder %s71, %s74
      %p80 = scmp.eq.s32.totalorder %s10, 0
      %p81 = por %p79, %p80
      %p82 = scmp.ne.s32.totalorder %s71, %s74
      %p83 = scmp.eq.s32.totalorder %s15, 3
      %p84 = por %p82, %p83
      %p85 = scmp.ne.s32.totalorder %s74, %s75
      %p86 = scmp.eq.s32.totalorder %s15, 0
      %p87 = por %p85, %p86
      %p88 = scmp.ne.s32.totalorder %s74, %s75
      %p89 = scmp.eq.s32.totalorder %s16, 3
      %p90 = por %p88, %p89
      %p92 = scmp.ne.s32.totalorder %s75, %s91
      %p93 = scmp.eq.s32.totalorder %s16, 0
      %p94 = por %p92, %p93
      %p95 = scmp.le.s32.totalorder 1, %s10
      %p96 = scmp.lt.s32.totalorder %s10, 5
      %p97 = pnand %p95, %p96
      %p98 = pneg %p97
      // Predicated region
      $region9: #{tpu_custom_call.1} parent=5 // pred_check
        _
      $region10: #{tpu_custom_call.1} parent=5 // pred_check_branch
        %100 = sbr.rel (%p97) target = $region12
      $region11: #{tpu_custom_call.1} parent=5 // pred_region
        %s101 = ssub.s32 %s10, 1
        // Predicated region
        $region13: #{tpu_custom_call.1} parent=11 // pred_check
          %p102 = pneg %p55
        $region14: #{tpu_custom_call.1} parent=11 // pred_check_branch
          %104 = sbr.rel (%p102) target = $region16
        $region15: #{tpu_custom_call.1} parent=11 // pred_region
          %s105 = smul.u32 2, %s20
          %p106 = scmp.lt.s32.totalorder %s105, 1
          %s107 = scalar_select %p106, %s105, 1
          %s108 = smul.addr %s107, 72
          %s109 = smul.addr %s108, 8
          %s110 = scalar_lea.vmem %s0, %s109
          %s111 = smul.u32 2, %s20
        $region16: #{tpu_custom_call.1} parent=11 // pred_fallthru
          _
      $region12: #{tpu_custom_call.1} parent=5 // pred_fallthru
        _
      %p112 = scmp.lt.s32.totalorder %s10, 4
      // Predicated region
      $region17: #{tpu_custom_call.1} parent=5 // pred_check
        %p113 = pneg %p112
      $region18: #{tpu_custom_call.1} parent=5 // pred_check_branch
        %115 = sbr.rel (%p113) target = $region20
      $region19: #{tpu_custom_call.1} parent=5 // pred_region
        _
      $region20: #{tpu_custom_call.1} parent=5 // pred_fallthru
        _
      %p116 = scmp.le.s32.totalorder 1, %s10
      %p117 = scmp.lt.s32.totalorder %s10, 5
      %p118 = pnand %p116, %p117
      %p119 = pneg %p118
      // Predicated region
      $region21: #{tpu_custom_call.1} parent=5 // pred_check
        _
      $region22: #{tpu_custom_call.1} parent=5 // pred_check_branch
        %121 = sbr.rel (%p118) target = $region24
      $region23: #{tpu_custom_call.1} parent=5 // pred_region
        %s122 = ssub.s32 %s10, 1
        %s123 = smul.u32 2, %s20
        %p124 = scmp.lt.s32.totalorder %s123, 1
        %s125 = scalar_select %p124, %s123, 1
        %s126 = smul.addr %s125, 72
        %s127 = smul.addr %s126, 8
        %s128 = scalar_lea.vmem %s0, %s127
        %p129 = pneg %p55
        %p130 = pneg %p52
        %p131 = pneg %p87
        %p132 = pneg %p84
        %s133 = sand.u32 %s74, 1
        %s134 = scalar_lea.sflag [#allocation3], %s133
        %s135 = sand.u32 %s74, 1
        %s136 = smul.addr %s135, 256
        %s137 = scalar_lea.vmem [#allocation2], %s136
        %s138 = smul.u32 2, %s20
        %p139 = scmp.lt.s32.totalorder %s138, 1
        %s140 = scalar_select %p139, %s138, 1
        %s141 = smul.addr %s140, 72
        %s142 = smul.addr %s141, 8
        %s143 = scalar_lea.vmem %s0, %s142
        %s144 = smul.u32 2, %s20
        %s145 = smul.u32 %s21, 2
        %s146 = sadd.s32 %s145, %s22
        %s147 = smul.u32 2, %s20
        %s148 = smul.u32 4, %s146
        %s149 = smul.u32 %s21, 3
        %s150 = sadd.s32 %s149, %s22
        %s151 = smul.u32 %s150, 4
        %s152 = smul.u32 %s151, 16
        %s153 = scalar_lea.vmem %s143, %s152
        %v154 = vld [vmem:[%s153] sm:$0xff]
        %v155 = vld [vmem:[%s153 + $0x8] sm:$0xff]
        %v156 = vld [vmem:[%s153 + $0x10] sm:$0xff]
        %v157 = vld [vmem:[%s153 + $0x18] sm:$0xff]
        %v158 = vld [vmem:[%s153 + $0x20] sm:$0xff]
        %v159 = vld [vmem:[%s153 + $0x28] sm:$0xff]
        %v160 = vld [vmem:[%s153 + $0x30] sm:$0xff]
        %v161 = vld [vmem:[%s153 + $0x38] sm:$0xff]
        %v162 = vld [vmem:[%s153 + $0x240] sm:$0xff]
        %v163 = vld [vmem:[%s153 + $0x248] sm:$0xff]
        %v164 = vld [vmem:[%s153 + $0x250] sm:$0xff]
        %v165 = vld [vmem:[%s153 + $0x258] sm:$0xff]
        %v166 = vld [vmem:[%s153 + $0x260] sm:$0xff]
        %v167 = vld [vmem:[%s153 + $0x268] sm:$0xff]
        %v168 = vld [vmem:[%s153 + $0x270] sm:$0xff]
        %v169 = vld [vmem:[%s153 + $0x278] sm:$0xff]
        %vm170 = vcmask 130048
        %171 = vst.msk [vmem:[%s137] sm:$0xff] %vm170, %v154
        %172 = vst.msk [vmem:[%s137 + $0x8] sm:$0xff] %vm170, %v155
        %173 = vst.msk [vmem:[%s137 + $0x20] sm:$0xff] %vm170, %v156
        %174 = vst.msk [vmem:[%s137 + $0x28] sm:$0xff] %vm170, %v157
        %175 = vst.msk [vmem:[%s137 + $0x40] sm:$0xff] %vm170, %v158
        %176 = vst.msk [vmem:[%s137 + $0x48] sm:$0xff] %vm170, %v159
        %177 = vst.msk [vmem:[%s137 + $0x60] sm:$0xff] %vm170, %v160
        %178 = vst.msk [vmem:[%s137 + $0x68] sm:$0xff] %vm170, %v161
        %179 = vst.msk [vmem:[%s137 + $0x80] sm:$0xff] %vm170, %v162
        %180 = vst.msk [vmem:[%s137 + $0x88] sm:$0xff] %vm170, %v163
        %181 = vst.msk [vmem:[%s137 + $0xa0] sm:$0xff] %vm170, %v164
        %182 = vst.msk [vmem:[%s137 + $0xa8] sm:$0xff] %vm170, %v165
        %183 = vst.msk [vmem:[%s137 + $0xc0] sm:$0xff] %vm170, %v166
        %184 = vst.msk [vmem:[%s137 + $0xc8] sm:$0xff] %vm170, %v167
        %185 = vst.msk [vmem:[%s137 + $0xe0] sm:$0xff] %vm170, %v168
        %186 = vst.msk [vmem:[%s137 + $0xe8] sm:$0xff] %vm170, %v169
        %s187 = sadd.s32 %s151, 4
        %s188 = smul.u32 %s187, 16
        %s189 = scalar_lea.vmem %s143, %s188
        %v190 = vld [vmem:[%s189] sm:$0xff]
        %v191 = vld [vmem:[%s189 + $0x8] sm:$0xff]
        %v192 = vld [vmem:[%s189 + $0x10] sm:$0xff]
        %v193 = vld [vmem:[%s189 + $0x18] sm:$0xff]
        %v194 = vld [vmem:[%s189 + $0x20] sm:$0xff]
        %v195 = vld [vmem:[%s189 + $0x28] sm:$0xff]
        %v196 = vld [vmem:[%s189 + $0x30] sm:$0xff]
        %v197 = vld [vmem:[%s189 + $0x38] sm:$0xff]
        %v198 = vld [vmem:[%s189 + $0x240] sm:$0xff]
        %v199 = vld [vmem:[%s189 + $0x248] sm:$0xff]
        %v200 = vld [vmem:[%s189 + $0x250] sm:$0xff]
        %v201 = vld [vmem:[%s189 + $0x258] sm:$0xff]
        %v202 = vld [vmem:[%s189 + $0x260] sm:$0xff]
        %v203 = vld [vmem:[%s189 + $0x268] sm:$0xff]
        %v204 = vld [vmem:[%s189 + $0x270] sm:$0xff]
        %v205 = vld [vmem:[%s189 + $0x278] sm:$0xff]
        %222 = vrot.lane.b32.xlu0 %v190, 16
        %v223 = vpop.permute.xlu0 %222
        %224 = vrot.lane.b32.xlu0 %v191, 16
        %v225 = vpop.permute.xlu0 %224
        %226 = vrot.lane.b32.xlu0 %v192, 16
        %v227 = vpop.permute.xlu0 %226
        %228 = vrot.lane.b32.xlu0 %v193, 16
        %v229 = vpop.permute.xlu0 %228
        %230 = vrot.lane.b32.xlu0 %v194, 16
        %v231 = vpop.permute.xlu0 %230
        %232 = vrot.lane.b32.xlu0 %v195, 16
        %v233 = vpop.permute.xlu0 %232
        %234 = vrot.lane.b32.xlu0 %v196, 16
        %v235 = vpop.permute.xlu0 %234
        %236 = vrot.lane.b32.xlu0 %v197, 16
        %v237 = vpop.permute.xlu0 %236
        %238 = vrot.lane.b32.xlu0 %v198, 16
        %v239 = vpop.permute.xlu0 %238
        %240 = vrot.lane.b32.xlu0 %v199, 16
        %v241 = vpop.permute.xlu0 %240
        %242 = vrot.lane.b32.xlu0 %v200, 16
        %v243 = vpop.permute.xlu0 %242
        %244 = vrot.lane.b32.xlu0 %v201, 16
        %v245 = vpop.permute.xlu0 %244
        %246 = vrot.lane.b32.xlu0 %v202, 16
        %v247 = vpop.permute.xlu0 %246
        %248 = vrot.lane.b32.xlu0 %v203, 16
        %v249 = vpop.permute.xlu0 %248
        %250 = vrot.lane.b32.xlu0 %v204, 16
        %v251 = vpop.permute.xlu0 %250
        %252 = vrot.lane.b32.xlu0 %v205, 16
        %v253 = vpop.permute.xlu0 %252
        %vm270 = vcmask 261248
        %271 = vst.msk [vmem:[%s137] sm:$0xff] %vm270, %v223
        %272 = vst.msk [vmem:[%s137 + $0x8] sm:$0xff] %vm270, %v225
        %273 = vst.msk [vmem:[%s137 + $0x20] sm:$0xff] %vm270, %v227
        %274 = vst.msk [vmem:[%s137 + $0x28] sm:$0xff] %vm270, %v229
        %275 = vst.msk [vmem:[%s137 + $0x40] sm:$0xff] %vm270, %v231
        %276 = vst.msk [vmem:[%s137 + $0x48] sm:$0xff] %vm270, %v233
        %277 = vst.msk [vmem:[%s137 + $0x60] sm:$0xff] %vm270, %v235
        %278 = vst.msk [vmem:[%s137 + $0x68] sm:$0xff] %vm270, %v237
        %279 = vst.msk [vmem:[%s137 + $0x80] sm:$0xff] %vm270, %v239
        %280 = vst.msk [vmem:[%s137 + $0x88] sm:$0xff] %vm270, %v241
        %281 = vst.msk [vmem:[%s137 + $0xa0] sm:$0xff] %vm270, %v243
        %282 = vst.msk [vmem:[%s137 + $0xa8] sm:$0xff] %vm270, %v245
        %283 = vst.msk [vmem:[%s137 + $0xc0] sm:$0xff] %vm270, %v247
        %284 = vst.msk [vmem:[%s137 + $0xc8] sm:$0xff] %vm270, %v249
        %285 = vst.msk [vmem:[%s137 + $0xe0] sm:$0xff] %vm270, %v251
        %286 = vst.msk [vmem:[%s137 + $0xe8] sm:$0xff] %vm270, %v253
        %s287 = sadd.s32 %s21, 1
        %s288 = smul.u32 %s287, 3
        %s289 = sadd.s32 %s288, %s22
        %s290 = smul.u32 %s289, 4
        %s291 = smul.u32 %s290, 16
        %s292 = scalar_lea.vmem %s143, %s291
        %v293 = vld [vmem:[%s292] sm:$0xff]
        %v294 = vld [vmem:[%s292 + $0x8] sm:$0xff]
        %v295 = vld [vmem:[%s292 + $0x10] sm:$0xff]
        %v296 = vld [vmem:[%s292 + $0x18] sm:$0xff]
        %v297 = vld [vmem:[%s292 + $0x20] sm:$0xff]
        %v298 = vld [vmem:[%s292 + $0x28] sm:$0xff]
        %v299 = vld [vmem:[%s292 + $0x30] sm:$0xff]
        %v300 = vld [vmem:[%s292 + $0x38] sm:$0xff]
        %v301 = vld [vmem:[%s292 + $0x240] sm:$0xff]
        %v302 = vld [vmem:[%s292 + $0x248] sm:$0xff]
        %v303 = vld [vmem:[%s292 + $0x250] sm:$0xff]
        %v304 = vld [vmem:[%s292 + $0x258] sm:$0xff]
        %v305 = vld [vmem:[%s292 + $0x260] sm:$0xff]
        %v306 = vld [vmem:[%s292 + $0x268] sm:$0xff]
        %v307 = vld [vmem:[%s292 + $0x270] sm:$0xff]
        %v308 = vld [vmem:[%s292 + $0x278] sm:$0xff]
        %309 = vst.msk [vmem:[%s137 + $0x10] sm:$0xff] %vm170, %v293
        %310 = vst.msk [vmem:[%s137 + $0x18] sm:$0xff] %vm170, %v294
        %311 = vst.msk [vmem:[%s137 + $0x30] sm:$0xff] %vm170, %v295
        %312 = vst.msk [vmem:[%s137 + $0x38] sm:$0xff] %vm170, %v296
        %313 = vst.msk [vmem:[%s137 + $0x50] sm:$0xff] %vm170, %v297
        %314 = vst.msk [vmem:[%s137 + $0x58] sm:$0xff] %vm170, %v298
        %315 = vst.msk [vmem:[%s137 + $0x70] sm:$0xff] %vm170, %v299
        %316 = vst.msk [vmem:[%s137 + $0x78] sm:$0xff] %vm170, %v300
        %317 = vst.msk [vmem:[%s137 + $0x90] sm:$0xff] %vm170, %v301
        %318 = vst.msk [vmem:[%s137 + $0x98] sm:$0xff] %vm170, %v302
        %319 = vst.msk [vmem:[%s137 + $0xb0] sm:$0xff] %vm170, %v303
        %320 = vst.msk [vmem:[%s137 + $0xb8] sm:$0xff] %vm170, %v304
        %321 = vst.msk [vmem:[%s137 + $0xd0] sm:$0xff] %vm170, %v305
        %322 = vst.msk [vmem:[%s137 + $0xd8] sm:$0xff] %vm170, %v306
        %323 = vst.msk [vmem:[%s137 + $0xf0] sm:$0xff] %vm170, %v307
        %324 = vst.msk [vmem:[%s137 + $0xf8] sm:$0xff] %vm170, %v308
        %s325 = sadd.s32 %s290, 4
        %s326 = smul.u32 %s325, 16
        %s327 = scalar_lea.vmem %s143, %s326
        %v328 = vld [vmem:[%s327] sm:$0xff]
        %v329 = vld [vmem:[%s327 + $0x8] sm:$0xff]
        %v330 = vld [vmem:[%s327 + $0x10] sm:$0xff]
        %v331 = vld [vmem:[%s327 + $0x18] sm:$0xff]
        %v332 = vld [vmem:[%s327 + $0x20] sm:$0xff]
        %v333 = vld [vmem:[%s327 + $0x28] sm:$0xff]
        %v334 = vld [vmem:[%s327 + $0x30] sm:$0xff]
        %v335 = vld [vmem:[%s327 + $0x38] sm:$0xff]
        %v336 = vld [vmem:[%s327 + $0x240] sm:$0xff]
        %v337 = vld [vmem:[%s327 + $0x248] sm:$0xff]
        %v338 = vld [vmem:[%s327 + $0x250] sm:$0xff]
        %v339 = vld [vmem:[%s327 + $0x258] sm:$0xff]
        %v340 = vld [vmem:[%s327 + $0x260] sm:$0xff]
        %v341 = vld [vmem:[%s327 + $0x268] sm:$0xff]
        %v342 = vld [vmem:[%s327 + $0x270] sm:$0xff]
        %v343 = vld [vmem:[%s327 + $0x278] sm:$0xff]
        %360 = vrot.lane.b32.xlu0 %v328, 16
        %v361 = vpop.permute.xlu0 %360
        %362 = vrot.lane.b32.xlu0 %v329, 16
        %v363 = vpop.permute.xlu0 %362
        %364 = vrot.lane.b32.xlu0 %v330, 16
        %v365 = vpop.permute.xlu0 %364
        %366 = vrot.lane.b32.xlu0 %v331, 16
        %v367 = vpop.permute.xlu0 %366
        %368 = vrot.lane.b32.xlu0 %v332, 16
        %v369 = vpop.permute.xlu0 %368
        %370 = vrot.lane.b32.xlu0 %v333, 16
        %v371 = vpop.permute.xlu0 %370
        %372 = vrot.lane.b32.xlu0 %v334, 16
        %v373 = vpop.permute.xlu0 %372
        %374 = vrot.lane.b32.xlu0 %v335, 16
        %v375 = vpop.permute.xlu0 %374
        %376 = vrot.lane.b32.xlu0 %v336, 16
        %v377 = vpop.permute.xlu0 %376
        %378 = vrot.lane.b32.xlu0 %v337, 16
        %v379 = vpop.permute.xlu0 %378
        %380 = vrot.lane.b32.xlu0 %v338, 16
        %v381 = vpop.permute.xlu0 %380
        %382 = vrot.lane.b32.xlu0 %v339, 16
        %v383 = vpop.permute.xlu0 %382
        %384 = vrot.lane.b32.xlu0 %v340, 16
        %v385 = vpop.permute.xlu0 %384
        %386 = vrot.lane.b32.xlu0 %v341, 16
        %v387 = vpop.permute.xlu0 %386
        %388 = vrot.lane.b32.xlu0 %v342, 16
        %v389 = vpop.permute.xlu0 %388
        %390 = vrot.lane.b32.xlu0 %v343, 16
        %v391 = vpop.permute.xlu0 %390
        %408 = vst.msk [vmem:[%s137 + $0x10] sm:$0xff] %vm270, %v361
        %409 = vst.msk [vmem:[%s137 + $0x18] sm:$0xff] %vm270, %v363
        %410 = vst.msk [vmem:[%s137 + $0x30] sm:$0xff] %vm270, %v365
        %411 = vst.msk [vmem:[%s137 + $0x38] sm:$0xff] %vm270, %v367
        %412 = vst.msk [vmem:[%s137 + $0x50] sm:$0xff] %vm270, %v369
        %413 = vst.msk [vmem:[%s137 + $0x58] sm:$0xff] %vm270, %v371
        %414 = vst.msk [vmem:[%s137 + $0x70] sm:$0xff] %vm270, %v373
        %415 = vst.msk [vmem:[%s137 + $0x78] sm:$0xff] %vm270, %v375
        %416 = vst.msk [vmem:[%s137 + $0x90] sm:$0xff] %vm270, %v377
        %417 = vst.msk [vmem:[%s137 + $0x98] sm:$0xff] %vm270, %v379
        %418 = vst.msk [vmem:[%s137 + $0xb0] sm:$0xff] %vm270, %v381
        %419 = vst.msk [vmem:[%s137 + $0xb8] sm:$0xff] %vm270, %v383
        %420 = vst.msk [vmem:[%s137 + $0xd0] sm:$0xff] %vm270, %v385
        %421 = vst.msk [vmem:[%s137 + $0xd8] sm:$0xff] %vm270, %v387
        %422 = vst.msk [vmem:[%s137 + $0xf0] sm:$0xff] %vm270, %v389
        %423 = vst.msk [vmem:[%s137 + $0xf8] sm:$0xff] %vm270, %v391
        %s424 = sand.u32 %s74, 1
        %s425 = scalar_lea.sflag [#allocation3], %s424
        %s426 = sand.u32 %s74, 1
        %s427 = smul.addr %s426, 256
        %s428 = scalar_lea.vmem [#allocation2], %s427
        // Predicated region
        $region25: #{tpu_custom_call.1} parent=23 // pred_check
          %p429 = pneg %p84
        $region26: #{tpu_custom_call.1} parent=23 // pred_check_branch
          %431 = sbr.rel (%p429) target = $region28
        $region27: #{tpu_custom_call.1} parent=23 // pred_region
          #allocation5 [shape = 'u32[6]{0}', space=smem, size = 0x18, scoped, tag = 'DMA stride descriptor']
          %s432 = smul.u32 %s21, 2
          %s433 = sadd.s32 %s432, %s22
          %s434 = smul.u32 2, %s20
          %s435 = smul.u32 4, %s433
          %s437 = ssub.s32 4096, 4096
          %438 = vsyncadd %s425, %s437
          %s439 = smul.addr %s435, 4
          %s440 = smul.addr %s434, 64
          %s441 = sadd.s32 %s439, %s440
          %s442 = smul.addr %s441, 128
          %s443 = scalar_lea.hbm %s1, %s442
          %s445 = sshll.u32 1, 14
          %s446 = sxor.u32 4294967295, %s445
          %s449 = sshll.u32 7, 18
          %s450 = sxor.u32 4294967295, %s449
          %s451 = sand.u32 0, %s450
          %s453 = sor.u32 %s451, 0
          %s455 = sshll.u32 3, 24
          %s456 = sxor.u32 4294967295, %s455
          %s457 = sand.u32 %s453, %s456
          %s459 = sor.u32 %s457, 0
          %s460 = sshll.u32 %s428, 4
          %s461 = int_to_ptr.vmem [resolvable:$true] %s460
          %467 = sst [smem:[#allocation5]] 2048
          %s468 = scalar_lea.smem [#allocation5], 1
          %469 = sst [smem:[%s468]] 8192
          %s470 = scalar_lea.smem [#allocation5], 2
          %471 = sst [smem:[%s470]] 16
          %s472 = scalar_lea.smem [#allocation5], 3
          %473 = sst [smem:[%s472]] 128
          %s474 = scalar_lea.smem [#allocation5], 4
          %475 = sst [smem:[%s474]] 128
          %s476 = scalar_lea.smem [#allocation5], 5
          %477 = sst [smem:[%s476]] 8
          %479 = dma.general %s461, 4096, %s443, %s425, [#allocation4], [#allocation5], %s459, 0
        $region28: #{tpu_custom_call.1} parent=23 // pred_fallthru
          _
      $region24: #{tpu_custom_call.1} parent=5 // pred_fallthru
        _
      %p480 = scmp.le.s32.totalorder 2, %s10
      // Predicated region
      $region29: #{tpu_custom_call.1} parent=5 // pred_check
        %p481 = pneg %p480
      $region30: #{tpu_custom_call.1} parent=5 // pred_check_branch
        %483 = sbr.rel (%p481) target = $region32
      $region31: #{tpu_custom_call.1} parent=5 // pred_region
        %s484 = ssub.s32 %s10, 2
        // Predicated region
        $region33: #{tpu_custom_call.1} parent=31 // pred_check
          %p485 = pneg %p90
        $region34: #{tpu_custom_call.1} parent=31 // pred_check_branch
          %487 = sbr.rel (%p485) target = $region36
        $region35: #{tpu_custom_call.1} parent=31 // pred_region
          %s488 = sand.u32 %s75, 1
          %s489 = scalar_lea.sflag [#allocation3], %s488
          %s490 = sand.u32 %s75, 1
          %s491 = smul.addr %s490, 256
          %s492 = scalar_lea.vmem [#allocation2], %s491
          %493 = dma.done %s489, 4096
        $region36: #{tpu_custom_call.1} parent=31 // pred_fallthru
          _
      $region32: #{tpu_custom_call.1} parent=5 // pred_fallthru
        _
    $region6: #{tpu_custom_call.1} parent=1 // loop_footer
      %s14 = sadd.s32 1, %s10
    $region7: #{tpu_custom_call.1} parent=1 // loop_footer_branch
      %9 = sbr.rel target = $region3
    $region8: #{tpu_custom_call.1} parent=1 // loop_exit
      _
    %494 = vsyncpa [#allocation3], 1
    %s495 = scalar_lea.sflag [#allocation3], 1
    %496 = vsyncpa %s495, 1

// kernel: tpu_custom_call.1
$region0: #{tpu_custom_call.1}
  #allocation0 [shape = 'u32[]', space=smem, size = 0x4, offset = 0x4, fixed_abs, tag = 'smem constant byte address 0x4 - core index']
  #allocation1 [shape = 'u32[144,128]{1,0:T(1,128)}', space=vmem, size = 0x12000, scoped, tag = 'internal scratch']
  #allocation4 [shape = 's32[]', space=sflag, size = 0x4, offset = 0, fixed_abs, tag = 'sflag constant byte address 0x0 - dummy sync flag']
  %s0 = inlined_call_operand.vmem [shape: f32[2,36,16,16], index: 0, kind: input, shape index: {}]
  %s1 = inlined_call_operand.hbm [shape: f32[2,16,32,32], index: 1, kind: output, shape index: {}]
  %s2 = sld [smem:[#allocation0]]
  $region37: #{tpu_custom_call.1} parent=0
    _
  %s4 = ssub.s32 1, %s2
  %s5 = scalar_select 0, %s4, %s2
  $region1: #{tpu_custom_call.1} parent=0
    #allocation2 [shape = 'u8[262144]{0}', space=vmem, size = 0x40000, scoped, tag = 'output window, operand 0']
    #allocation3 [shape = 's32[2]{0}', space=sflag, size = 0x8, scoped, tag = 'scoped memory for tpu_custom_call.1']
    %6 = vsyncpa [#allocation3], 0
    %s7 = scalar_lea.sflag [#allocation3], 1
    %8 = vsyncpa %s7, 0
    loop: start=0, step=1, limit=6
    $region2: #{tpu_custom_call.1} parent=1 // loop_pre_header
      _
    $region3: #{tpu_custom_call.1} parent=1 // loop_header
      %s10 = sphi 0, %s14
      %p11 = scmp.ge.s32.totalorder %s10, 6
      %s17 = sphi 0, %s36
      %s18 = sphi 0, %s32
      %s19 = sphi 0, %s28
      %s20 = sphi 0, %s17
      %s21 = sphi 0, %s18
      %s22 = sphi 0, %s19
      %s23 = sphi 0, %s20
      %s24 = sphi 0, %s21
      %s25 = sphi 0, %s22
      %s39 = sphi 0, %s41
      %s42 = sphi 0, %s39
      %s43 = sphi 0, %s42
      %s59 = sphi 0, %s43
      %s71 = sphi 0, %s73
      %s74 = sphi 0, %s71
      %s75 = sphi 0, %s74
      %s91 = sphi 0, %s75
    $region4: #{tpu_custom_call.1} parent=1 // loop_header_branch
      %13 = sbr.rel (%p11) target = $region8
    $region5: #{tpu_custom_call.1} parent=1 // loop_body
      %s15 = ssub.s32 %s10, 1
      %s16 = ssub.s32 %s10, 2
      %s26 = sadd.s32 1, %s19
      %p27 = scmp.ge.s32.totalorder %s26, 2
      %s28 = scalar_select %p27, 0, %s26
      %s29 = sadd.s32 1, %s18
      %s30 = scalar_select %p27, %s29, %s18
      %p31 = scmp.ge.s32.totalorder %s30, 2
      %s32 = scalar_select %p31, 0, %s30
      %s33 = sadd.s32 1, %s17
      %s34 = scalar_select %p31, %s33, %s17
      %p35 = scmp.ge.s32.totalorder %s34, 1
      %s36 = scalar_select %p35, 0, %s34
      %s37 = ssub.s32 %s17, %s36
      %p38 = scmp.eq.s32.totalorder %s37, 0
      %s40 = sadd.s32 %s39, 1
      %s41 = scalar_select %p38, %s39, %s40
      %p44 = pneg %p38
      %p45 = scmp.eq.s32.totalorder %s10, 3
      %p46 = por %p44, %p45
      %p47 = scmp.ne.s32.totalorder %s39, %s42
      %p48 = scmp.eq.s32.totalorder %s10, 0
      %p49 = por %p47, %p48
      %p50 = scmp.ne.s32.totalorder %s39, %s42
      %p51 = scmp.eq.s32.totalorder %s15, 3
      %p52 = por %p50, %p51
      %p53 = scmp.ne.s32.totalorder %s42, %s43
      %p54 = scmp.eq.s32.totalorder %s15, 0
      %p55 = por %p53, %p54
      %p56 = scmp.ne.s32.totalorder %s42, %s43
      %p57 = scmp.eq.s32.totalorder %s16, 3
      %p58 = por %p56, %p57
      %p60 = scmp.ne.s32.totalorder %s43, %s59
      %p61 = scmp.eq.s32.totalorder %s16, 0
      %p62 = por %p60, %p61
      %s63 = smul.u32 %s18, 2
      %s64 = sadd.s32 %s63, %s19
      %s65 = smul.u32 %s32, 2
      %s66 = sadd.s32 %s65, %s28
      %s67 = ssub.s32 %s17, %s36
      %s68 = ssub.s32 %s64, %s66
      %s69 = sor.u32 %s67, %s68
      %p70 = scmp.eq.s32.totalorder %s69, 0
      %s72 = sadd.s32 %s71, 1
      %s73 = scalar_select %p70, %s71, %s72
      %p76 = pneg %p70
      %p77 = scmp.eq.s32.totalorder %s10, 3
      %p78 = por %p76, %p77
      %p79 = scmp.ne.s32.totalorder %s71, %s74
      %p80 = scmp.eq.s32.totalorder %s10, 0
      %p81 = por %p79, %p80
      %p82 = scmp.ne.s32.totalorder %s71, %s74
      %p83 = scmp.eq.s32.totalorder %s15, 3
      %p84 = por %p82, %p83
      %p85 = scmp.ne.s32.totalorder %s74, %s75
      %p86 = scmp.eq.s32.totalorder %s15, 0
      %p87 = por %p85, %p86
      %p88 = scmp.ne.s32.totalorder %s74, %s75
      %p89 = scmp.eq.s32.totalorder %s16, 3
      %p90 = por %p88, %p89
      %p92 = scmp.ne.s32.totalorder %s75, %s91
      %p93 = scmp.eq.s32.totalorder %s16, 0
      %p94 = por %p92, %p93
      %p95 = scmp.le.s32.totalorder 1, %s10
      %p96 = scmp.lt.s32.totalorder %s10, 5
      %p97 = pnand %p95, %p96
      %p98 = pneg %p97
      // Predicated region
      $region9: #{tpu_custom_call.1} parent=5 // pred_check
        _
      $region10: #{tpu_custom_call.1} parent=5 // pred_check_branch
        %100 = sbr.rel (%p97) target = $region12
      $region11: #{tpu_custom_call.1} parent=5 // pred_region
        %s101 = ssub.s32 %s10, 1
        // Predicated region
        $region13: #{tpu_custom_call.1} parent=11 // pred_check
          %p102 = pneg %p55
        $region14: #{tpu_custom_call.1} parent=11 // pred_check_branch
          %104 = sbr.rel (%p102) target = $region16
        $region15: #{tpu_custom_call.1} parent=11 // pred_region
          %s105 = smul.u32 2, %s20
          %p106 = scmp.lt.s32.totalorder %s105, 1
          %s107 = scalar_select %p106, %s105, 1
          %s108 = smul.addr %s107, 72
          %s109 = smul.addr %s108, 8
          %s110 = scalar_lea.vmem %s0, %s109
          %s111 = smul.u32 2, %s20
        $region16: #{tpu_custom_call.1} parent=11 // pred_fallthru
          _
      $region12: #{tpu_custom_call.1} parent=5 // pred_fallthru
        _
      %p112 = scmp.lt.s32.totalorder %s10, 4
      // Predicated region
      $region17: #{tpu_custom_call.1} parent=5 // pred_check
        %p113 = pneg %p112
      $region18: #{tpu_custom_call.1} parent=5 // pred_check_branch
        %115 = sbr.rel (%p113) target = $region20
      $region19: #{tpu_custom_call.1} parent=5 // pred_region
        _
      $region20: #{tpu_custom_call.1} parent=5 // pred_fallthru
        _
      %p116 = scmp.le.s32.totalorder 1, %s10
      %p117 = scmp.lt.s32.totalorder %s10, 5
      %p118 = pnand %p116, %p117
      %p119 = pneg %p118
      // Predicated region
      $region21: #{tpu_custom_call.1} parent=5 // pred_check
        _
      $region22: #{tpu_custom_call.1} parent=5 // pred_check_branch
        %121 = sbr.rel (%p118) target = $region24
      $region23: #{tpu_custom_call.1} parent=5 // pred_region
        %s122 = ssub.s32 %s10, 1
        %s123 = smul.u32 2, %s20
        %p124 = scmp.lt.s32.totalorder %s123, 1
        %s125 = scalar_select %p124, %s123, 1
        %s126 = smul.addr %s125, 72
        %s127 = smul.addr %s126, 8
        %s128 = scalar_lea.vmem %s0, %s127
        %p129 = pneg %p55
        %p130 = pneg %p52
        %p131 = pneg %p87
        %p132 = pneg %p84
        %s133 = sand.u32 %s74, 1
        %s134 = scalar_lea.sflag [#allocation3], %s133
        %s135 = sand.u32 %s74, 1
        %s136 = smul.addr %s135, 256
        %s137 = scalar_lea.vmem [#allocation2], %s136
        %s138 = smul.u32 2, %s20
        %p139 = scmp.lt.s32.totalorder %s138, 1
        %s140 = scalar_select %p139, %s138, 1
        %s141 = smul.addr %s140, 72
        %s142 = smul.addr %s141, 8
        %s143 = scalar_lea.vmem %s0, %s142
        %s144 = smul.u32 2, %s20
        %s145 = smul.u32 %s21, 2
        %s146 = sadd.s32 %s145, %s22
        %s147 = smul.u32 2, %s20
        %s148 = smul.u32 4, %s146
        %s149 = smul.u32 %s21, 3
        %s150 = sadd.s32 %s149, %s22
        %s151 = smul.u32 %s150, 4
        %s152 = smul.u32 %s151, 16
        %s153 = scalar_lea.vmem %s143, %s152
        %v154 = vld [vmem:[%s153] sm:$0xff]
        %v155 = vld [vmem:[%s153 + $0x8] sm:$0xff]
        %v156 = vld [vmem:[%s153 + $0x10] sm:$0xff]
        %v157 = vld [vmem:[%s153 + $0x18] sm:$0xff]
        %v158 = vld [vmem:[%s153 + $0x20] sm:$0xff]
        %v159 = vld [vmem:[%s153 + $0x28] sm:$0xff]
        %v160 = vld [vmem:[%s153 + $0x30] sm:$0xff]
        %v161 = vld [vmem:[%s153 + $0x38] sm:$0xff]
        %v162 = vld [vmem:[%s153 + $0x240] sm:$0xff]
        %v163 = vld [vmem:[%s153 + $0x248] sm:$0xff]
        %v164 = vld [vmem:[%s153 + $0x250] sm:$0xff]
        %v165 = vld [vmem:[%s153 + $0x258] sm:$0xff]
        %v166 = vld [vmem:[%s153 + $0x260] sm:$0xff]
        %v167 = vld [vmem:[%s153 + $0x268] sm:$0xff]
        %v168 = vld [vmem:[%s153 + $0x270] sm:$0xff]
        %v169 = vld [vmem:[%s153 + $0x278] sm:$0xff]
        %vm170 = vcmask 130048
        %171 = vst.msk [vmem:[%s137] sm:$0xff] %vm170, %v154
        %172 = vst.msk [vmem:[%s137 + $0x8] sm:$0xff] %vm170, %v155
        %173 = vst.msk [vmem:[%s137 + $0x20] sm:$0xff] %vm170, %v156
        %174 = vst.msk [vmem:[%s137 + $0x28] sm:$0xff] %vm170, %v157
        %175 = vst.msk [vmem:[%s137 + $0x40] sm:$0xff] %vm170, %v158
        %176 = vst.msk [vmem:[%s137 + $0x48] sm:$0xff] %vm170, %v159
        %177 = vst.msk [vmem:[%s137 + $0x60] sm:$0xff] %vm170, %v160
        %178 = vst.msk [vmem:[%s137 + $0x68] sm:$0xff] %vm170, %v161
        %179 = vst.msk [vmem:[%s137 + $0x80] sm:$0xff] %vm170, %v162
        %180 = vst.msk [vmem:[%s137 + $0x88] sm:$0xff] %vm170, %v163
        %181 = vst.msk [vmem:[%s137 + $0xa0] sm:$0xff] %vm170, %v164
        %182 = vst.msk [vmem:[%s137 + $0xa8] sm:$0xff] %vm170, %v165
        %183 = vst.msk [vmem:[%s137 + $0xc0] sm:$0xff] %vm170, %v166
        %184 = vst.msk [vmem:[%s137 + $0xc8] sm:$0xff] %vm170, %v167
        %185 = vst.msk [vmem:[%s137 + $0xe0] sm:$0xff] %vm170, %v168
        %186 = vst.msk [vmem:[%s137 + $0xe8] sm:$0xff] %vm170, %v169
        %s187 = sadd.s32 %s151, 4
        %s188 = smul.u32 %s187, 16
        %s189 = scalar_lea.vmem %s143, %s188
        %v190 = vld [vmem:[%s189] sm:$0xff]
        %v191 = vld [vmem:[%s189 + $0x8] sm:$0xff]
        %v192 = vld [vmem:[%s189 + $0x10] sm:$0xff]
        %v193 = vld [vmem:[%s189 + $0x18] sm:$0xff]
        %v194 = vld [vmem:[%s189 + $0x20] sm:$0xff]
        %v195 = vld [vmem:[%s189 + $0x28] sm:$0xff]
        %v196 = vld [vmem:[%s189 + $0x30] sm:$0xff]
        %v197 = vld [vmem:[%s189 + $0x38] sm:$0xff]
        %v198 = vld [vmem:[%s189 + $0x240] sm:$0xff]
        %v199 = vld [vmem:[%s189 + $0x248] sm:$0xff]
        %v200 = vld [vmem:[%s189 + $0x250] sm:$0xff]
        %v201 = vld [vmem:[%s189 + $0x258] sm:$0xff]
        %v202 = vld [vmem:[%s189 + $0x260] sm:$0xff]
        %v203 = vld [vmem:[%s189 + $0x268] sm:$0xff]
        %v204 = vld [vmem:[%s189 + $0x270] sm:$0xff]
        %v205 = vld [vmem:[%s189 + $0x278] sm:$0xff]
        %222 = vrot.lane.b32.xlu0 %v190, 16
        %v223 = vpop.permute.xlu0 %222
        %224 = vrot.lane.b32.xlu0 %v191, 16
        %v225 = vpop.permute.xlu0 %224
        %226 = vrot.lane.b32.xlu0 %v192, 16
        %v227 = vpop.permute.xlu0 %226
        %228 = vrot.lane.b32.xlu0 %v193, 16
        %v229 = vpop.permute.xlu0 %228
        %230 = vrot.lane.b32.xlu0 %v194, 16
        %v231 = vpop.permute.xlu0 %230
        %232 = vrot.lane.b32.xlu0 %v195, 16
        %v233 = vpop.permute.xlu0 %232
        %234 = vrot.lane.b32.xlu0 %v196, 16
        %v235 = vpop.permute.xlu0 %234
        %236 = vrot.lane.b32.xlu0 %v197, 16
        %v237 = vpop.permute.xlu0 %236
        %238 = vrot.lane.b32.xlu0 %v198, 16
        %v239 = vpop.permute.xlu0 %238
        %240 = vrot.lane.b32.xlu0 %v199, 16
        %v241 = vpop.permute.xlu0 %240
        %242 = vrot.lane.b32.xlu0 %v200, 16
        %v243 = vpop.permute.xlu0 %242
        %244 = vrot.lane.b32.xlu0 %v201, 16
        %v245 = vpop.permute.xlu0 %244
        %246 = vrot.lane.b32.xlu0 %v202, 16
        %v247 = vpop.permute.xlu0 %246
        %248 = vrot.lane.b32.xlu0 %v203, 16
        %v249 = vpop.permute.xlu0 %248
        %250 = vrot.lane.b32.xlu0 %v204, 16
        %v251 = vpop.permute.xlu0 %250
        %252 = vrot.lane.b32.xlu0 %v205, 16
        %v253 = vpop.permute.xlu0 %252
        %vm270 = vcmask 261248
        %271 = vst.msk [vmem:[%s137] sm:$0xff] %vm270, %v223
        %272 = vst.msk [vmem:[%s137 + $0x8] sm:$0xff] %vm270, %v225
        %273 = vst.msk [vmem:[%s137 + $0x20] sm:$0xff] %vm270, %v227
        %274 = vst.msk [vmem:[%s137 + $0x28] sm:$0xff] %vm270, %v229
        %275 = vst.msk [vmem:[%s137 + $0x40] sm:$0xff] %vm270, %v231
        %276 = vst.msk [vmem:[%s137 + $0x48] sm:$0xff] %vm270, %v233
        %277 = vst.msk [vmem:[%s137 + $0x60] sm:$0xff] %vm270, %v235
        %278 = vst.msk [vmem:[%s137 + $0x68] sm:$0xff] %vm270, %v237
        %279 = vst.msk [vmem:[%s137 + $0x80] sm:$0xff] %vm270, %v239
        %280 = vst.msk [vmem:[%s137 + $0x88] sm:$0xff] %vm270, %v241
        %281 = vst.msk [vmem:[%s137 + $0xa0] sm:$0xff] %vm270, %v243
        %282 = vst.msk [vmem:[%s137 + $0xa8] sm:$0xff] %vm270, %v245
        %283 = vst.msk [vmem:[%s137 + $0xc0] sm:$0xff] %vm270, %v247
        %284 = vst.msk [vmem:[%s137 + $0xc8] sm:$0xff] %vm270, %v249
        %285 = vst.msk [vmem:[%s137 + $0xe0] sm:$0xff] %vm270, %v251
        %286 = vst.msk [vmem:[%s137 + $0xe8] sm:$0xff] %vm270, %v253
        %s287 = sadd.s32 %s21, 1
        %s288 = smul.u32 %s287, 3
        %s289 = sadd.s32 %s288, %s22
        %s290 = smul.u32 %s289, 4
        %s291 = smul.u32 %s290, 16
        %s292 = scalar_lea.vmem %s143, %s291
        %v293 = vld [vmem:[%s292] sm:$0xff]
        %v294 = vld [vmem:[%s292 + $0x8] sm:$0xff]
        %v295 = vld [vmem:[%s292 + $0x10] sm:$0xff]
        %v296 = vld [vmem:[%s292 + $0x18] sm:$0xff]
        %v297 = vld [vmem:[%s292 + $0x20] sm:$0xff]
        %v298 = vld [vmem:[%s292 + $0x28] sm:$0xff]
        %v299 = vld [vmem:[%s292 + $0x30] sm:$0xff]
        %v300 = vld [vmem:[%s292 + $0x38] sm:$0xff]
        %v301 = vld [vmem:[%s292 + $0x240] sm:$0xff]
        %v302 = vld [vmem:[%s292 + $0x248] sm:$0xff]
        %v303 = vld [vmem:[%s292 + $0x250] sm:$0xff]
        %v304 = vld [vmem:[%s292 + $0x258] sm:$0xff]
        %v305 = vld [vmem:[%s292 + $0x260] sm:$0xff]
        %v306 = vld [vmem:[%s292 + $0x268] sm:$0xff]
        %v307 = vld [vmem:[%s292 + $0x270] sm:$0xff]
        %v308 = vld [vmem:[%s292 + $0x278] sm:$0xff]
        %309 = vst.msk [vmem:[%s137 + $0x10] sm:$0xff] %vm170, %v293
        %310 = vst.msk [vmem:[%s137 + $0x18] sm:$0xff] %vm170, %v294
        %311 = vst.msk [vmem:[%s137 + $0x30] sm:$0xff] %vm170, %v295
        %312 = vst.msk [vmem:[%s137 + $0x38] sm:$0xff] %vm170, %v296
        %313 = vst.msk [vmem:[%s137 + $0x50] sm:$0xff] %vm170, %v297
        %314 = vst.msk [vmem:[%s137 + $0x58] sm:$0xff] %vm170, %v298
        %315 = vst.msk [vmem:[%s137 + $0x70] sm:$0xff] %vm170, %v299
        %316 = vst.msk [vmem:[%s137 + $0x78] sm:$0xff] %vm170, %v300
        %317 = vst.msk [vmem:[%s137 + $0x90] sm:$0xff] %vm170, %v301
        %318 = vst.msk [vmem:[%s137 + $0x98] sm:$0xff] %vm170, %v302
        %319 = vst.msk [vmem:[%s137 + $0xb0] sm:$0xff] %vm170, %v303
        %320 = vst.msk [vmem:[%s137 + $0xb8] sm:$0xff] %vm170, %v304
        %321 = vst.msk [vmem:[%s137 + $0xd0] sm:$0xff] %vm170, %v305
        %322 = vst.msk [vmem:[%s137 + $0xd8] sm:$0xff] %vm170, %v306
        %323 = vst.msk [vmem:[%s137 + $0xf0] sm:$0xff] %vm170, %v307
        %324 = vst.msk [vmem:[%s137 + $0xf8] sm:$0xff] %vm170, %v308
        %s325 = sadd.s32 %s290, 4
        %s326 = smul.u32 %s325, 16
        %s327 = scalar_lea.vmem %s143, %s326
        %v328 = vld [vmem:[%s327] sm:$0xff]
        %v329 = vld [vmem:[%s327 + $0x8] sm:$0xff]
        %v330 = vld [vmem:[%s327 + $0x10] sm:$0xff]
        %v331 = vld [vmem:[%s327 + $0x18] sm:$0xff]
        %v332 = vld [vmem:[%s327 + $0x20] sm:$0xff]
        %v333 = vld [vmem:[%s327 + $0x28] sm:$0xff]
        %v334 = vld [vmem:[%s327 + $0x30] sm:$0xff]
        %v335 = vld [vmem:[%s327 + $0x38] sm:$0xff]
        %v336 = vld [vmem:[%s327 + $0x240] sm:$0xff]
        %v337 = vld [vmem:[%s327 + $0x248] sm:$0xff]
        %v338 = vld [vmem:[%s327 + $0x250] sm:$0xff]
        %v339 = vld [vmem:[%s327 + $0x258] sm:$0xff]
        %v340 = vld [vmem:[%s327 + $0x260] sm:$0xff]
        %v341 = vld [vmem:[%s327 + $0x268] sm:$0xff]
        %v342 = vld [vmem:[%s327 + $0x270] sm:$0xff]
        %v343 = vld [vmem:[%s327 + $0x278] sm:$0xff]
        %360 = vrot.lane.b32.xlu0 %v328, 16
        %v361 = vpop.permute.xlu0 %360
        %362 = vrot.lane.b32.xlu0 %v329, 16
        %v363 = vpop.permute.xlu0 %362
        %364 = vrot.lane.b32.xlu0 %v330, 16
        %v365 = vpop.permute.xlu0 %364
        %366 = vrot.lane.b32.xlu0 %v331, 16
        %v367 = vpop.permute.xlu0 %366
        %368 = vrot.lane.b32.xlu0 %v332, 16
        %v369 = vpop.permute.xlu0 %368
        %370 = vrot.lane.b32.xlu0 %v333, 16
        %v371 = vpop.permute.xlu0 %370
        %372 = vrot.lane.b32.xlu0 %v334, 16
        %v373 = vpop.permute.xlu0 %372
        %374 = vrot.lane.b32.xlu0 %v335, 16
        %v375 = vpop.permute.xlu0 %374
        %376 = vrot.lane.b32.xlu0 %v336, 16
        %v377 = vpop.permute.xlu0 %376
        %378 = vrot.lane.b32.xlu0 %v337, 16
        %v379 = vpop.permute.xlu0 %378
        %380 = vrot.lane.b32.xlu0 %v338, 16
        %v381 = vpop.permute.xlu0 %380
        %382 = vrot.lane.b32.xlu0 %v339, 16
        %v383 = vpop.permute.xlu0 %382
        %384 = vrot.lane.b32.xlu0 %v340, 16
        %v385 = vpop.permute.xlu0 %384
        %386 = vrot.lane.b32.xlu0 %v341, 16
        %v387 = vpop.permute.xlu0 %386
        %388 = vrot.lane.b32.xlu0 %v342, 16
        %v389 = vpop.permute.xlu0 %388
        %390 = vrot.lane.b32.xlu0 %v343, 16
        %v391 = vpop.permute.xlu0 %390
        %408 = vst.msk [vmem:[%s137 + $0x10] sm:$0xff] %vm270, %v361
        %409 = vst.msk [vmem:[%s137 + $0x18] sm:$0xff] %vm270, %v363
        %410 = vst.msk [vmem:[%s137 + $0x30] sm:$0xff] %vm270, %v365
        %411 = vst.msk [vmem:[%s137 + $0x38] sm:$0xff] %vm270, %v367
        %412 = vst.msk [vmem:[%s137 + $0x50] sm:$0xff] %vm270, %v369
        %413 = vst.msk [vmem:[%s137 + $0x58] sm:$0xff] %vm270, %v371
        %414 = vst.msk [vmem:[%s137 + $0x70] sm:$0xff] %vm270, %v373
        %415 = vst.msk [vmem:[%s137 + $0x78] sm:$0xff] %vm270, %v375
        %416 = vst.msk [vmem:[%s137 + $0x90] sm:$0xff] %vm270, %v377
        %417 = vst.msk [vmem:[%s137 + $0x98] sm:$0xff] %vm270, %v379
        %418 = vst.msk [vmem:[%s137 + $0xb0] sm:$0xff] %vm270, %v381
        %419 = vst.msk [vmem:[%s137 + $0xb8] sm:$0xff] %vm270, %v383
        %420 = vst.msk [vmem:[%s137 + $0xd0] sm:$0xff] %vm270, %v385
        %421 = vst.msk [vmem:[%s137 + $0xd8] sm:$0xff] %vm270, %v387
        %422 = vst.msk [vmem:[%s137 + $0xf0] sm:$0xff] %vm270, %v389
        %423 = vst.msk [vmem:[%s137 + $0xf8] sm:$0xff] %vm270, %v391
        %s424 = sand.u32 %s74, 1
        %s425 = scalar_lea.sflag [#allocation3], %s424
        %s426 = sand.u32 %s74, 1
        %s427 = smul.addr %s426, 256
        %s428 = scalar_lea.vmem [#allocation2], %s427
        // Predicated region
        $region25: #{tpu_custom_call.1} parent=23 // pred_check
          %p429 = pneg %p84
        $region26: #{tpu_custom_call.1} parent=23 // pred_check_branch
          %431 = sbr.rel (%p429) target = $region28
        $region27: #{tpu_custom_call.1} parent=23 // pred_region
          #allocation5 [shape = 'u32[6]{0}', space=smem, size = 0x18, scoped, tag = 'DMA stride descriptor']
          %s432 = smul.u32 %s21, 2
          %s433 = sadd.s32 %s432, %s22
          %s434 = smul.u32 2, %s20
          %s435 = smul.u32 4, %s433
          %s437 = ssub.s32 4096, 4096
          %438 = vsyncadd %s425, %s437
          %s439 = smul.addr %s435, 4
          %s440 = smul.addr %s434, 64
          %s441 = sadd.s32 %s439, %s440
          %s442 = smul.addr %s441, 128
          %s443 = scalar_lea.hbm %s1, %s442
          %s445 = sshll.u32 1, 14
          %s446 = sxor.u32 4294967295, %s445
          %s449 = sshll.u32 7, 18
          %s450 = sxor.u32 4294967295, %s449
          %s451 = sand.u32 0, %s450
          %s453 = sor.u32 %s451, 0
          %s455 = sshll.u32 3, 24
          %s456 = sxor.u32 4294967295, %s455
          %s457 = sand.u32 %s453, %s456
          %s459 = sor.u32 %s457, 0
          %s460 = sshll.u32 %s428, 4
          %s461 = int_to_ptr.vmem [resolvable:$true] %s460
          %467 = sst [smem:[#allocation5]] 2048
          %s468 = scalar_lea.smem [#allocation5], 1
          %469 = sst [smem:[%s468]] 8192
          %s470 = scalar_lea.smem [#allocation5], 2
          %471 = sst [smem:[%s470]] 16
          %s472 = scalar_lea.smem [#allocation5], 3
          %473 = sst [smem:[%s472]] 128
          %s474 = scalar_lea.smem [#allocation5], 4
          %475 = sst [smem:[%s474]] 128
          %s476 = scalar_lea.smem [#allocation5], 5
          %477 = sst [smem:[%s476]] 8
          %479 = dma.general %s461, 4096, %s443, %s425, [#allocation4], [#allocation5], %s459, 0
        $region28: #{tpu_custom_call.1} parent=23 // pred_fallthru
          _
      $region24: #{tpu_custom_call.1} parent=5 // pred_fallthru
        _
      %p480 = scmp.le.s32.totalorder 2, %s10
      // Predicated region
      $region29: #{tpu_custom_call.1} parent=5 // pred_check
        %p481 = pneg %p480
      $region30: #{tpu_custom_call.1} parent=5 // pred_check_branch
        %483 = sbr.rel (%p481) target = $region32
      $region31: #{tpu_custom_call.1} parent=5 // pred_region
        %s484 = ssub.s32 %s10, 2
        // Predicated region
        $region33: #{tpu_custom_call.1} parent=31 // pred_check
          %p485 = pneg %p90
        $region34: #{tpu_custom_call.1} parent=31 // pred_check_branch
          %487 = sbr.rel (%p485) target = $region36
        $region35: #{tpu_custom_call.1} parent=31 // pred_region
          %s488 = sand.u32 %s75, 1
          %s489 = scalar_lea.sflag [#allocation3], %s488
          %s490 = sand.u32 %s75, 1
          %s491 = smul.addr %s490, 256
          %s492 = scalar_lea.vmem [#allocation2], %s491
          %493 = dma.done %s489, 4096
        $region36: #{tpu_custom_call.1} parent=31 // pred_fallthru
          _
      $region32: #{tpu_custom_call.1} parent=5 // pred_fallthru
        _
    $region6: #{tpu_custom_call.1} parent=1 // loop_footer
      %s14 = sadd.s32 1, %s10
    $region7: #{tpu_custom_call.1} parent=1 // loop_footer_branch
      %9 = sbr.rel target = $region3
    $region8: #{tpu_custom_call.1} parent=1 // loop_exit
      _
    %494 = vsyncpa [#allocation3], 1
    %s495 = scalar_lea.sflag [#allocation3], 1
    %496 = vsyncpa %s495, 1

</llo_original>
